<compile_context>
chip_gen: v7x
topology: tpu7x:2x2x1
jax: 0.10.0
libtpu: 0.0.40
codegen_flags: <defaults>
</compile_context>

<pallas_src>
from functools import partial

import jax
import jax.numpy as jnp
import numpy as np
from jax.experimental import pallas as pl
from jax.experimental.pallas import tpu as pltpu

_LANE = 128                      # vreg lane width
_MAX_COLS = 1024                 # lane-dense last dim: up to 8 full vregs wide
_MAX_TILE_BYTES = 4 * 1024 * 1024  # 4 MiB tile -> 16 MiB double-buffered in+out
_VMEM_LIMIT_BYTES = 48 * 1024 * 1024  # safe on v5e/v6e (128 MiB) and v7x (64 MiB)


def _sublane_for(dtype) -> int:
    """Native sublane tile for a dtype: 8 (f32), 16 (bf16/f16), 32 (int8/fp8)."""
    return max(8, 32 // jnp.dtype(dtype).itemsize)


# ----------------------------------------------------------------------------
# Fast path: single HBM->HBM DMA (no VMEM staging, no reshape, no padding).
# Used for the abstract BaseEncoder identity.
# ----------------------------------------------------------------------------
def _hbm_copy_kernel(x_ref, o_ref, sem):
    cp = pltpu.make_async_copy(x_ref, o_ref, sem)
    cp.start()
    cp.wait()


def _identity_fast(x):
    return pl.pallas_call(
        _hbm_copy_kernel,
        out_shape=jax.ShapeDtypeStruct(x.shape, x.dtype),
        in_specs=[pl.BlockSpec(memory_space=pl.ANY)],
        out_specs=pl.BlockSpec(memory_space=pl.ANY),
        scratch_shapes=[pltpu.SemaphoreType.DMA],
        cost_estimate=pl.CostEstimate(
            flops=0, transcendentals=0, bytes_accessed=2 * x.size * x.dtype.itemsize
        ),
    )(x)


_base_encoder_forward = jax.jit(_identity_fast)


# ----------------------------------------------------------------------------
# Tiled, lane-dense, pipelined pass-through: the scaffold concrete subclasses
# would replace with real encoder compute on each (row_tile, cols) VMEM tile.
# ----------------------------------------------------------------------------
def _copy_kernel(x_ref, o_ref):
    # TODO(synk): BaseEncoder.forward is abstract in PyTorch (raises
    # NotImplementedError); concrete subclasses replace this pass-through with
    # real encoder compute on the lane-dense VMEM tile.
    o_ref[...] = x_ref[...]


def _plan_slab(total: int, dtype):
    """Plan a lane-dense (rows, cols) slab, pad amount, row tile and grid size."""
    sub = _sublane_for(dtype)
    itemsize = jnp.dtype(dtype).itemsize

    # Prefer a 128-multiple that divides `total` exactly (no host-side pad),
    # widest first; among divisors prefer rows on the dtype's native sublane tile.
    candidates = [c for c in range(_MAX_COLS, _LANE - 1, -_LANE) if total % c == 0]
    cols = None
    for c in candidates:
        if (total // c) % sub == 0:
            cols = c
            break
    if cols is None and candidates:
        cols = candidates[0]

    if cols is not None:
        rows = total // cols
        pad = 0
    else:
        # Fallback: minimal padding with a 128-wide (still full-lane) slab.
        cols = _LANE
        rows = pl.cdiv(total, cols)
        rows = pl.cdiv(rows, sub) * sub
        pad = rows * cols - total

    if rows % sub != 0:
        # Ragged row count: a single full-extent block is still legal tiling.
        row_tile = rows
    else:
        vmem_cap_rows = max(sub, (_MAX_TILE_BYTES // (cols * itemsize)) // sub * sub)
        # Aim for >=2 grid steps so v7x megacore has work for both TensorCores.
        half_rows = max(sub, (rows // 2) // sub * sub)
        row_tile = min(vmem_cap_rows, half_rows, rows)

    grid = pl.cdiv(rows, row_tile)
    return rows, cols, row_tile, pad, grid


def _tiled_passthrough_impl(x):
    orig_shape = x.shape
    total = int(np.prod(orig_shape))
    itemsize = jnp.dtype(x.dtype).itemsize

    rows, cols, row_tile, pad, grid = _plan_slab(total, x.dtype)

    if pad == 0:
        slab = x.reshape(rows, cols)
    else:
        flat = jnp.pad(x.reshape(total), (0, pad))
        slab = flat.reshape(rows, cols)

    out = pl.pallas_call(
        _copy_kernel,
        out_shape=jax.ShapeDtypeStruct((rows, cols), slab.dtype),
        grid=(grid,),
        in_specs=[pl.BlockSpec((row_tile, cols), lambda i: (i, 0))],
        out_specs=pl.BlockSpec((row_tile, cols), lambda i: (i, 0)),
        compiler_params=pltpu.CompilerParams(
            dimension_semantics=("parallel",),
            vmem_limit_bytes=_VMEM_LIMIT_BYTES,
        ),
        cost_estimate=pl.CostEstimate(
            flops=0, transcendentals=0, bytes_accessed=2 * rows * cols * itemsize
        ),
    )(slab)

    if pad == 0:
        return out.reshape(orig_shape)
    return out.reshape(rows * cols)[:total].reshape(orig_shape)


_tiled_passthrough = jax.jit(_tiled_passthrough_impl)


class BaseEncoderPallas:
    """The base encoder interface for the encoder-decoder architecture (Pallas)."""

    def __init__(self, **kwargs):
        # No parameters: the PyTorch BaseEncoder.__init__ defines none.
        pass

    def forward(self, X, *args):
        # Abstract in PyTorch; here the call path is exercised end-to-end on TPU
        # via a single HBM->HBM DMA identity kernel.  Extra *args are ignored,
        # matching the abstract signature.
        return _base_encoder_forward(X)

    __call__ = forward


if __name__ == "__main__":
    key = jax.random.PRNGKey(0)
    # Small NCHW input consistent with an encoder interface.
    x = jax.random.normal(key, (2, 4, 16, 16), dtype=jnp.float32)

    enc = BaseEncoderPallas()

    # Fast path (what forward() uses).
    y = jax.block_until_ready(enc(x))
    assert y.shape == x.shape and y.dtype == x.dtype
    assert bool(jnp.allclose(y, x))

    # Tiled lane-dense scaffold (what concrete subclasses would build on).
    y2 = jax.block_until_ready(_tiled_passthrough(x))
    assert y2.shape == x.shape and y2.dtype == x.dtype
    assert bool(jnp.allclose(y2, x))

    print("KERNEL_OK")
</pallas_src>

<mosaic_0001>
module attributes {stable_mosaic.version = 11 : i64} {
  func.func @_hbm_copy_kernel(%arg0: memref<2x4x16x16xf32, #tpu.memory_space<any>>, %arg1: memref<2x4x16x16xf32, #tpu.memory_space<any>>, %arg2: memref<!tpu.dma_semaphore, #tpu.memory_space<semaphore_mem>>) attributes {dimension_semantics = [], scalar_prefetch = 0 : i64, scratch_operands = 1 : i64, tpu.core_type = #tpu.core_type<tc>} {
    tpu.enqueue_dma source(%arg0 : memref<2x4x16x16xf32, #tpu.memory_space<any>>) target(%arg1 : memref<2x4x16x16xf32, #tpu.memory_space<any>>) target_semaphore(%arg2 : memref<!tpu.dma_semaphore, #tpu.memory_space<semaphore_mem>>)
    tpu.wait_dma2 semaphore(%arg2 : memref<!tpu.dma_semaphore, #tpu.memory_space<semaphore_mem>>) src(%arg0 : memref<2x4x16x16xf32, #tpu.memory_space<any>>) dst(%arg1 : memref<2x4x16x16xf32, #tpu.memory_space<any>>)
    return
  }
}

</mosaic_0001>

<llo_original>
// kernel: _identity_fast.1
$region0: #{_identity_fast.1}
  #allocation0 [shape = 'u32[]', space=smem, size = 0x4, offset = 0x4, fixed_abs, tag = 'smem constant byte address 0x4 - core index']
  #allocation1 [shape = 'u32[144,128]{1,0:T(1,128)}', space=vmem, size = 0x12000, scoped, tag = 'internal scratch']
  #allocation2 [shape = 's32[1]{0}', space=sflag, size = 0x4, scoped, tag = 'scratch operand']
  #allocation3 [shape = 's32[]', space=sflag, size = 0x4, offset = 0, fixed_abs, tag = 'sflag constant byte address 0x0 - dummy sync flag']
  #allocation4 [shape = 'u32[0]{0}', space=smem, size = 0, offset = 0, fixed_abs, tag = 'smem constant byte address 0x0 - null']
  %s0 = inlined_call_operand.hbm [shape: f32[2,4,16,16], index: 0, kind: input, shape index: {}]
  %s1 = inlined_call_operand.hbm [shape: f32[2,4,16,16], index: 1, kind: output, shape index: {}]
  %s2 = sld [smem:[#allocation0]]
  $region2: #{_identity_fast.1} parent=0
    _
  %s4 = ssub.s32 1, %s2
  %s5 = scalar_select 0, %s4, %s2
  %s7 = sshll.u32 1, 14
  %s8 = sxor.u32 4294967295, %s7
  %s11 = sshll.u32 3, 24
  %s12 = sxor.u32 4294967295, %s11
  %s13 = sand.u32 0, %s12
  %s15 = sor.u32 %s13, 0
  %18 = dma.general %s0, 2048, %s1, [#allocation2], [#allocation3], [#allocation4], %s15, 0
  %s19 = smul.u32 2, 4
  %s20 = smul.u32 %s19, 16
  %s21 = smul.u32 %s20, 1
  %s22 = sshll.u32 %s21, 4
  %23 = dma.done [#allocation2], %s22
  %24 = vsyncmov [#allocation2]
  %s25 = vpop.sfrf %24
  %p26 = scmp.eq.s32.totalorder %s25, 0
  %p27 = pneg %p26
  %29 = shalt.err (%p27)

</llo_original>
